<compile_context>
chip_gen: v7x
topology: tpu7x:2x2x1
jax: 0.10.0
libtpu: 0.0.40
codegen_flags: <defaults>
</compile_context>

<pallas_src>
import math
from functools import partial

import jax
import jax.numpy as jnp
from jax.experimental import pallas as pl
from jax.experimental.pallas import tpu as pltpu


# --------------------------------------------------------------------------
# Tiling helpers
# --------------------------------------------------------------------------
def _tile(dim, preferred, align, min_steps=1):
    """Largest align-aligned divisor of `dim` <= preferred, preferring a tile
    that leaves at least `min_steps` grid steps; falls back to the full dim."""
    if dim <= align:
        return dim
    limit = min(preferred, dim)
    if min_steps > 1:
        limit = min(limit, max(align, dim // min_steps))
    t = (limit // align) * align
    while t >= align:
        if dim % t == 0:
            return t
        t -= align
    return dim


def _sr_group(n_groups, ws, max_rows=256):
    """Row-group count per grid step for the SR-conv kernel: largest divisor G
    of n_groups with G*ws <= max_rows, sublane-aligned output blocks, and >=2
    grid steps when possible."""
    cand = [g for g in range(1, n_groups + 1)
            if n_groups % g == 0 and (g * ws) % 8 == 0 and g * ws <= max_rows]
    multi = [g for g in cand if n_groups // g >= 2]
    if multi:
        return max(multi)
    if cand:
        return max(cand)
    return n_groups


# --------------------------------------------------------------------------
# Pallas kernels
# --------------------------------------------------------------------------
def _linear_kernel(x_ref, w_ref, b_ref, o_ref, acc_ref):
    # x: [tm, tk] bf16, w: [tk, tn] bf16 (pre-transposed), b: [1, tn] f32.
    @pl.when(pl.program_id(2) == 0)
    def _init():
        acc_ref[...] = jnp.zeros_like(acc_ref)

    acc_ref[...] += jnp.dot(x_ref[...], w_ref[...],
                            preferred_element_type=jnp.float32)

    @pl.when(pl.program_id(2) == pl.num_programs(2) - 1)
    def _finalize():
        o_ref[...] = (acc_ref[...] + b_ref[...]).astype(o_ref.dtype)


def _sr_conv_ln_kernel(x_ref, w_ref, b_ref, g_ref, beta_ref, o_ref, *, eps):
    # Spatial-reduction conv (kernel = stride = s) fused with LayerNorm.
    # x: [G, s, Ws, s*C] bf16 (pure view of the token-major activation; axis 1
    #    is the kernel-row index kh, the last axis packs (kw, Cin)).
    # w: [s, s*C, C] bf16 (per-kh (kw, Cin) x Cout slabs); b/g/beta: [1, C] f32.
    # o: [G*Ws, C] bf16.
    G, s, Ws, sC = x_ref.shape
    C = o_ref.shape[-1]
    x = x_ref[...]
    acc = jnp.zeros((G * Ws, C), jnp.float32)
    for kh in range(s):                      # small static unroll (s = sr_ratio)
        xk = x[:, kh].reshape(G * Ws, sC)
        acc = acc + jnp.dot(xk, w_ref[kh], preferred_element_type=jnp.float32)
    y = acc + b_ref[...]
    mean = jnp.mean(y, axis=-1, keepdims=True)
    var = jnp.mean((y - mean) ** 2, axis=-1, keepdims=True)
    yn = (y - mean) * jax.lax.rsqrt(var + eps)
    o_ref[...] = (yn * g_ref[...] + beta_ref[...]).astype(o_ref.dtype)


def _fused_attn_kernel(x_ref, wq_ref, bq_ref, kv_ref, wp_ref, bp_ref, o_ref, *,
                       num_heads):
    # Fused q-projection -> per-head attention -> output-projection.
    # x:  [1, tq, C] bf16 tokens            wq: [C, C] bf16 (softmax scale folded)
    # bq: [1, C] f32 (scaled; zeros when qkv_bias=False)
    # kv: [1, Nk, 2C] bf16 (raw kv projection, row layout [k | v] per head)
    # wp: [C, C] bf16 output projection     bp: [1, C] f32
    # o:  [1, tq, C] -- single lane-dense store per grid step.
    tq = x_ref.shape[1]
    C = x_ref.shape[2]
    d = C // num_heads

    q = jnp.dot(x_ref[0], wq_ref[...], preferred_element_type=jnp.float32)
    q = (q + bq_ref[...]).astype(jnp.bfloat16)          # already softmax-scaled
    kv = kv_ref[0]

    acc = jnp.zeros((tq, C), jnp.float32)                # output-proj accumulator
    for h in range(num_heads):                           # static unroll over heads
        qh = q[:, h * d:(h + 1) * d]                     # [tq, d]
        kh = kv[:, h * d:(h + 1) * d]                    # [Nk, d]
        vh = kv[:, C + h * d:C + (h + 1) * d]            # [Nk, d]
        # q @ k^T by contracting d on both operands (no in-kernel transpose).
        s = jax.lax.dot_general(qh, kh, (((1,), (1,)), ((), ())),
                                preferred_element_type=jnp.float32)   # [tq, Nk]
        m = jnp.max(s, axis=-1, keepdims=True)
        p = jnp.exp(s - m)
        l = jnp.sum(p, axis=-1, keepdims=True)
        attn = (p * pl.reciprocal(l, approx=True)).astype(jnp.bfloat16)
        oh = jnp.dot(attn, vh, preferred_element_type=jnp.float32)    # [tq, d]
        # Fold this head's slice of the output projection directly into acc:
        # lane-dense [tq, C] accumulation, no [tq, d] partial stores.
        acc += jnp.dot(oh.astype(jnp.bfloat16), wp_ref[h * d:(h + 1) * d, :],
                       preferred_element_type=jnp.float32)
    o_ref[0] = (acc + bp_ref[...]).astype(o_ref.dtype)


# --------------------------------------------------------------------------
# Pallas wrappers
# --------------------------------------------------------------------------
def pallas_linear(x2d, w_t, b, *, tm_pref=256, tn_pref=256, tk_pref=512):
    # x2d: [M, K] bf16; w_t: [K, Nout] bf16 (already transposed); b: [Nout] f32.
    M, K = x2d.shape
    Nout = w_t.shape[1]
    tm = _tile(M, tm_pref, 8, min_steps=2)
    tn = _tile(Nout, tn_pref, 128, min_steps=2)
    tk = _tile(K, tk_pref, 128)
    grid = (M // tm, Nout // tn, K // tk)
    return pl.pallas_call(
        _linear_kernel,
        out_shape=jax.ShapeDtypeStruct((M, Nout), x2d.dtype),
        grid=grid,
        in_specs=[
            pl.BlockSpec((tm, tk), lambda i, j, k: (i, k)),
            pl.BlockSpec((tk, tn), lambda i, j, k: (k, j)),
            pl.BlockSpec((1, tn), lambda i, j, k: (0, j)),
        ],
        out_specs=pl.BlockSpec((tm, tn), lambda i, j, k: (i, j)),
        scratch_shapes=[pltpu.VMEM((tm, tn), jnp.float32)],
        compiler_params=pltpu.CompilerParams(
            dimension_semantics=("parallel", "parallel", "arbitrary")),
    )(x2d, w_t, b.reshape(1, Nout).astype(jnp.float32))


def pallas_sr_conv_ln(x_view, w_sr_t, b_sr, gamma, beta, *, eps=1e-5):
    # x_view: [B*Hs, s, Ws, s*C] bf16 (reshape view, no transpose);
    # w_sr_t: [s, s*C, C] bf16.  Output: [B*Hs*Ws, C] bf16 (LayerNorm applied).
    BHs, s, Ws, sC = x_view.shape
    C = w_sr_t.shape[-1]
    G = _sr_group(BHs, Ws)
    grid = (BHs // G,)
    return pl.pallas_call(
        partial(_sr_conv_ln_kernel, eps=eps),
        out_shape=jax.ShapeDtypeStruct((BHs * Ws, C), jnp.bfloat16),
        grid=grid,
        in_specs=[
            pl.BlockSpec((G, s, Ws, sC), lambda i: (i, 0, 0, 0)),
            pl.BlockSpec((s, sC, C), lambda i: (0, 0, 0)),
            pl.BlockSpec((1, C), lambda i: (0, 0)),
            pl.BlockSpec((1, C), lambda i: (0, 0)),
            pl.BlockSpec((1, C), lambda i: (0, 0)),
        ],
        out_specs=pl.BlockSpec((G * Ws, C), lambda i: (i, 0)),
        compiler_params=pltpu.CompilerParams(
            dimension_semantics=("parallel",)),
    )(x_view, w_sr_t,
      b_sr.reshape(1, C).astype(jnp.float32),
      gamma.reshape(1, C).astype(jnp.float32),
      beta.reshape(1, C).astype(jnp.float32))


def pallas_fused_attention(x_bf, wq_t, bq, kv, wproj_t, b_proj, *, num_heads,
                           out_dtype, tq_pref=128):
    # x_bf: [B, N, C] bf16; kv: [B, Nk, 2C] bf16; wq_t/wproj_t: [C, C] bf16.
    B, N, C = x_bf.shape
    Nk = kv.shape[1]
    tq = _tile(N, tq_pref, 8, min_steps=2)
    grid = (B, N // tq)
    return pl.pallas_call(
        partial(_fused_attn_kernel, num_heads=num_heads),
        out_shape=jax.ShapeDtypeStruct((B, N, C), out_dtype),
        grid=grid,
        in_specs=[
            pl.BlockSpec((1, tq, C), lambda b, i: (b, i, 0)),
            pl.BlockSpec((C, C), lambda b, i: (0, 0)),          # wq (resident)
            pl.BlockSpec((1, C), lambda b, i: (0, 0)),          # bq
            pl.BlockSpec((1, Nk, 2 * C), lambda b, i: (b, 0, 0)),  # kv resident/batch
            pl.BlockSpec((C, C), lambda b, i: (0, 0)),          # wproj (resident)
            pl.BlockSpec((1, C), lambda b, i: (0, 0)),          # bproj
        ],
        out_specs=pl.BlockSpec((1, tq, C), lambda b, i: (b, i, 0)),
        compiler_params=pltpu.CompilerParams(
            dimension_semantics=("parallel", "parallel")),
    )(x_bf, wq_t, bq.reshape(1, C).astype(jnp.float32), kv, wproj_t,
      b_proj.reshape(1, C).astype(jnp.float32))


# --------------------------------------------------------------------------
# Full forward (Pallas kernels + pure-JAX glue reshapes only)
# --------------------------------------------------------------------------
def pvt_attention_forward(x, H, W, params, num_heads, sr_ratio):
    B, N, C = x.shape
    d = C // num_heads
    scale = d ** (-0.5)
    out_dtype = x.dtype

    x_bf = x.astype(jnp.bfloat16)

    # Pre-transpose weights once: nn.Linear [out, in] -> [in, out] (lane-dense RHS),
    # cast to bf16 for the MXU, and fold the softmax scale into wq / bq.
    wq_t = (params["wq"].T * scale).astype(jnp.bfloat16)
    bq = params["bq"] * scale                       # zeros when qkv_bias=False
    wkv_t = params["wkv"].T.astype(jnp.bfloat16)
    wproj_t = params["w_proj"].T.astype(jnp.bfloat16)

    if sr_ratio > 1:
        s = sr_ratio
        Hs, Ws = H // s, W // s
        Nk = Hs * Ws
        # Pure reshape view of the token-major activation -- no im2col, no HBM
        # transpose: [B, Hs, s, Ws, s, C] -> [B*Hs, s, Ws, s*C].
        x_view = x_bf.reshape(B * Hs, s, Ws, s * C)
        # Conv weight [Cout, Cin, kh, kw] -> [kh, kw*Cin, Cout] matching the view.
        w_sr_t = (params["w_sr"].transpose(2, 3, 1, 0)
                  .reshape(s, s * C, C).astype(jnp.bfloat16))
        # conv + LayerNorm fused into one kernel (kh accumulated in-kernel).
        x_kv = pallas_sr_conv_ln(x_view, w_sr_t, params["b_sr"],
                                 params["g_norm"], params["b_norm"])
    else:
        Nk = N
        x_kv = x_bf.reshape(B * N, C)
    # TODO(synk): linear=True branch (AdaptiveAvgPool2d(7) + 1x1 conv + GELU) not implemented.

    kv = pallas_linear(x_kv, wkv_t, params["bkv"]).reshape(B, Nk, 2 * C)

    # q-projection + per-head attention + output projection in one kernel.
    out = pallas_fused_attention(x_bf, wq_t, bq, kv, wproj_t, params["b_proj"],
                                 num_heads=num_heads, out_dtype=out_dtype)
    return out


# --------------------------------------------------------------------------
# Pure-JAX f32 reference (independent path: lax.conv, jax.nn.softmax)
# --------------------------------------------------------------------------
def reference_forward(x, H, W, params, num_heads, sr_ratio):
    B, N, C = x.shape
    d = C // num_heads
    scale = d ** (-0.5)
    q = (x @ params["wq"].T + params["bq"]).reshape(B, N, num_heads, d).transpose(0, 2, 1, 3)
    if sr_ratio > 1:
        x_ = x.transpose(0, 2, 1).reshape(B, C, H, W)
        x_ = jax.lax.conv_general_dilated(
            x_, params["w_sr"], window_strides=(sr_ratio, sr_ratio),
            padding="VALID", dimension_numbers=("NCHW", "OIHW", "NCHW"))
        x_ = x_ + params["b_sr"][None, :, None, None]
        x_ = x_.reshape(B, C, -1).transpose(0, 2, 1)
        mean = x_.mean(-1, keepdims=True)
        var = ((x_ - mean) ** 2).mean(-1, keepdims=True)
        x_ = (x_ - mean) / jnp.sqrt(var + 1e-5) * params["g_norm"] + params["b_norm"]
    else:
        x_ = x
    kv = (x_ @ params["wkv"].T + params["bkv"]).reshape(B, -1, 2, num_heads, d).transpose(2, 0, 3, 1, 4)
    k, v = kv[0], kv[1]
    attn = jnp.einsum("bhnd,bhmd->bhnm", q, k) * scale
    attn = jax.nn.softmax(attn, axis=-1)
    out = jnp.einsum("bhnm,bhmd->bhnd", attn, v).transpose(0, 2, 1, 3).reshape(B, N, C)
    return out @ params["w_proj"].T + params["b_proj"]


# --------------------------------------------------------------------------
# Deterministic parameter init (mirrors module __init__ shapes)
# --------------------------------------------------------------------------
def init_params(key, dim, sr_ratio):
    ks = jax.random.split(key, 4)
    fan_out = sr_ratio * sr_ratio * dim
    return {
        "wq": jax.random.normal(ks[0], (dim, dim), jnp.float32) * 0.02,
        "bq": jnp.zeros((dim,), jnp.float32),                        # qkv_bias=False
        "wkv": jax.random.normal(ks[1], (2 * dim, dim), jnp.float32) * 0.02,
        "bkv": jnp.zeros((2 * dim,), jnp.float32),                   # qkv_bias=False
        "w_proj": jax.random.normal(ks[2], (dim, dim), jnp.float32) * 0.02,
        "b_proj": jnp.zeros((dim,), jnp.float32),
        "w_sr": jax.random.normal(ks[3], (dim, dim, sr_ratio, sr_ratio), jnp.float32)
        * math.sqrt(2.0 / fan_out),
        "b_sr": jnp.zeros((dim,), jnp.float32),
        "g_norm": jnp.ones((dim,), jnp.float32),
        "b_norm": jnp.zeros((dim,), jnp.float32),
    }


if __name__ == "__main__":
    B, H, W = 2, 16, 16
    C, num_heads = 128, 4
    N = H * W

    key = jax.random.PRNGKey(0)
    kx, kp = jax.random.split(key)
    x = jax.random.normal(kx, (B, N, C), jnp.float32)

    # sr_ratio > 1 path (spatial-reduction conv + LN + attention)
    params = init_params(kp, C, 2)
    out = jax.block_until_ready(pvt_attention_forward(x, H, W, params, num_heads, 2))
    ref = reference_forward(x, H, W, params, num_heads, 2)
    assert out.shape == (B, N, C) and out.dtype == jnp.float32
    # bf16 matmul operands + approx softmax reciprocal vs f32 reference.
    assert jnp.allclose(out, ref, rtol=2e-2, atol=5e-3), float(jnp.max(jnp.abs(out - ref)))

    # sr_ratio == 1 path (no spatial reduction)
    params1 = init_params(kp, C, 1)
    out1 = jax.block_until_ready(pvt_attention_forward(x, H, W, params1, num_heads, 1))
    ref1 = reference_forward(x, H, W, params1, num_heads, 1)
    assert jnp.allclose(out1, ref1, rtol=2e-2, atol=5e-3), float(jnp.max(jnp.abs(out1 - ref1)))

    print("KERNEL_OK")
</pallas_src>

<mosaic_0001>
module attributes {stable_mosaic.version = 11 : i64} {
  func.func @_sr_conv_ln_kernel(%arg0: i32, %arg1: memref<8x2x8x256xbf16, #tpu.memory_space<vmem>>, %arg2: memref<2x256x128xbf16, #tpu.memory_space<vmem>>, %arg3: memref<1x128xf32, #tpu.memory_space<vmem>>, %arg4: memref<1x128xf32, #tpu.memory_space<vmem>>, %arg5: memref<1x128xf32, #tpu.memory_space<vmem>>, %arg6: memref<64x128xbf16, #tpu.memory_space<vmem>>) attributes {dimension_semantics = [#tpu.dimension_semantics<parallel>], iteration_bounds = array<i64: 2>, scalar_prefetch = 0 : i64, scratch_operands = 0 : i64, tpu.core_type = #tpu.core_type<tc>, window_params = [{transform_indices = @transform_0, window_bounds = array<i64: 8, 2, 8, 256>}, {pipeline_mode = #tpu.pipeline_mode<synchronous>, transform_indices = @transform_1, window_bounds = array<i64: 2, 256, 128>}, {pipeline_mode = #tpu.pipeline_mode<synchronous>, transform_indices = @transform_2, window_bounds = array<i64: 1, 128>}, {pipeline_mode = #tpu.pipeline_mode<synchronous>, transform_indices = @transform_3, window_bounds = array<i64: 1, 128>}, {pipeline_mode = #tpu.pipeline_mode<synchronous>, transform_indices = @transform_4, window_bounds = array<i64: 1, 128>}, {transform_indices = @transform_5, window_bounds = array<i64: 64, 128>}]} {
    %c0 = arith.constant 0 : index
    %c0_0 = arith.constant 0 : index
    %c0_1 = arith.constant 0 : index
    %c0_2 = arith.constant 0 : index
    %0 = vector.load %arg1[%c0, %c0_0, %c0_1, %c0_2] : memref<8x2x8x256xbf16, #tpu.memory_space<vmem>>, vector<8x2x8x256xbf16>
    %cst = arith.constant 0.000000e+00 : f32
    %1 = vector.broadcast %cst : f32 to vector<64x128xf32>
    %2 = vector.extract_strided_slice %0 {offsets = [0, 0, 0, 0], sizes = [8, 1, 8, 256], strides = [1, 1, 1, 1]} : vector<8x2x8x256xbf16> to vector<8x1x8x256xbf16>
    %3 = vector.shape_cast %2 : vector<8x1x8x256xbf16> to vector<8x8x256xbf16>
    %4 = vector.shape_cast %3 : vector<8x8x256xbf16> to vector<64x256xbf16>
    %c0_3 = arith.constant 0 : index
    %c0_4 = arith.constant 0 : index
    %c0_5 = arith.constant 0 : index
    %5 = vector.load %arg2[%c0_3, %c0_4, %c0_5] : memref<2x256x128xbf16, #tpu.memory_space<vmem>>, vector<1x256x128xbf16>
    %6 = vector.shape_cast %5 : vector<1x256x128xbf16> to vector<256x128xbf16>
    %cst_6 = arith.constant dense<0.000000e+00> : vector<64x128xf32>
    %7 = tpu.matmul %4, %6, %cst_6 {dimension_numbers = #tpu.dot_dimension_numbers<[1], [0], [0], [1], [0, 0, 1, 1], [], []>} : vector<64x256xbf16>, vector<256x128xbf16>, vector<64x128xf32> -> vector<64x128xf32>
    %8 = arith.addf %1, %7 : vector<64x128xf32>
    %9 = vector.extract_strided_slice %0 {offsets = [0, 1, 0, 0], sizes = [8, 1, 8, 256], strides = [1, 1, 1, 1]} : vector<8x2x8x256xbf16> to vector<8x1x8x256xbf16>
    %10 = vector.shape_cast %9 : vector<8x1x8x256xbf16> to vector<8x8x256xbf16>
    %11 = vector.shape_cast %10 : vector<8x8x256xbf16> to vector<64x256xbf16>
    %c1 = arith.constant 1 : index
    %c0_7 = arith.constant 0 : index
    %c0_8 = arith.constant 0 : index
    %12 = vector.load %arg2[%c1, %c0_7, %c0_8] : memref<2x256x128xbf16, #tpu.memory_space<vmem>>, vector<1x256x128xbf16>
    %13 = vector.shape_cast %12 : vector<1x256x128xbf16> to vector<256x128xbf16>
    %cst_9 = arith.constant dense<0.000000e+00> : vector<64x128xf32>
    %14 = tpu.matmul %11, %13, %cst_9 {dimension_numbers = #tpu.dot_dimension_numbers<[1], [0], [0], [1], [0, 0, 1, 1], [], []>} : vector<64x256xbf16>, vector<256x128xbf16>, vector<64x128xf32> -> vector<64x128xf32>
    %15 = arith.addf %8, %14 : vector<64x128xf32>
    %c0_10 = arith.constant 0 : index
    %c0_11 = arith.constant 0 : index
    %16 = vector.load %arg3[%c0_10, %c0_11] : memref<1x128xf32, #tpu.memory_space<vmem>>, vector<1x128xf32>
    %17 = vector.broadcast %16 : vector<1x128xf32> to vector<64x128xf32>
    %18 = arith.addf %15, %17 : vector<64x128xf32>
    %cst_12 = arith.constant dense<0.000000e+00> : vector<64xf32>
    %19 = vector.multi_reduction <add>, %18, %cst_12 [1] : vector<64x128xf32> to vector<64xf32>
    %20 = vector.shape_cast %19 : vector<64xf32> to vector<64x1xf32>
    %cst_13 = arith.constant 1.280000e+02 : f32
    %21 = vector.broadcast %cst_13 : f32 to vector<64x1xf32>
    %22 = arith.divf %20, %21 : vector<64x1xf32>
    %23 = vector.broadcast %22 : vector<64x1xf32> to vector<64x128xf32>
    %24 = arith.subf %18, %23 : vector<64x128xf32>
    %25 = arith.mulf %24, %24 : vector<64x128xf32>
    %cst_14 = arith.constant dense<0.000000e+00> : vector<64xf32>
    %26 = vector.multi_reduction <add>, %25, %cst_14 [1] : vector<64x128xf32> to vector<64xf32>
    %27 = vector.shape_cast %26 : vector<64xf32> to vector<64x1xf32>
    %cst_15 = arith.constant 1.280000e+02 : f32
    %28 = vector.broadcast %cst_15 : f32 to vector<64x1xf32>
    %29 = arith.divf %27, %28 : vector<64x1xf32>
    %30 = vector.broadcast %22 : vector<64x1xf32> to vector<64x128xf32>
    %31 = arith.subf %18, %30 : vector<64x128xf32>
    %cst_16 = arith.constant 9.99999974E-6 : f32
    %32 = vector.broadcast %cst_16 : f32 to vector<64x1xf32>
    %33 = arith.addf %29, %32 : vector<64x1xf32>
    %34 = math.rsqrt %33 : vector<64x1xf32>
    %35 = vector.broadcast %34 : vector<64x1xf32> to vector<64x128xf32>
    %36 = arith.mulf %31, %35 : vector<64x128xf32>
    %c0_17 = arith.constant 0 : index
    %c0_18 = arith.constant 0 : index
    %37 = vector.load %arg4[%c0_17, %c0_18] : memref<1x128xf32, #tpu.memory_space<vmem>>, vector<1x128xf32>
    %38 = vector.broadcast %37 : vector<1x128xf32> to vector<64x128xf32>
    %39 = arith.mulf %36, %38 : vector<64x128xf32>
    %c0_19 = arith.constant 0 : index
    %c0_20 = arith.constant 0 : index
    %40 = vector.load %arg5[%c0_19, %c0_20] : memref<1x128xf32, #tpu.memory_space<vmem>>, vector<1x128xf32>
    %41 = vector.broadcast %40 : vector<1x128xf32> to vector<64x128xf32>
    %42 = arith.addf %39, %41 : vector<64x128xf32>
    %43 = arith.truncf %42 : vector<64x128xf32> to vector<64x128xbf16>
    %c0_21 = arith.constant 0 : index
    %c0_22 = arith.constant 0 : index
    %44 = vector.load %arg6[%c0_21, %c0_22] : memref<64x128xbf16, #tpu.memory_space<vmem>>, vector<64x128xbf16>
    tpu.vector_store %arg6[%c0_21, %c0_22], %43 {strides = array<i32>} : memref<64x128xbf16, #tpu.memory_space<vmem>>, vector<64x128xbf16>,
    return
  }
  func.func @transform_0(%arg0: i32) -> (i32, i32, i32, i32) {
    %c0_i32 = arith.constant 0 : i32
    %c0_i32_0 = arith.constant 0 : i32
    %c0_i32_1 = arith.constant 0 : i32
    %c0_i32_2 = arith.constant 0 : i32
    return %arg0, %c0_i32, %c0_i32_0, %c0_i32_1 : i32, i32, i32, i32
  }
  func.func @transform_1(%arg0: i32) -> (i32, i32, i32) {
    %c0_i32 = arith.constant 0 : i32
    %c0_i32_0 = arith.constant 0 : i32
    %c0_i32_1 = arith.constant 0 : i32
    %c0_i32_2 = arith.constant 0 : i32
    return %c0_i32, %c0_i32_0, %c0_i32_1 : i32, i32, i32
  }
  func.func @transform_2(%arg0: i32) -> (i32, i32) {
    %c0_i32 = arith.constant 0 : i32
    %c0_i32_0 = arith.constant 0 : i32
    %c0_i32_1 = arith.constant 0 : i32
    return %c0_i32, %c0_i32_0 : i32, i32
  }
  func.func @transform_3(%arg0: i32) -> (i32, i32) {
    %c0_i32 = arith.constant 0 : i32
    %c0_i32_0 = arith.constant 0 : i32
    %c0_i32_1 = arith.constant 0 : i32
    return %c0_i32, %c0_i32_0 : i32, i32
  }
  func.func @transform_4(%arg0: i32) -> (i32, i32) {
    %c0_i32 = arith.constant 0 : i32
    %c0_i32_0 = arith.constant 0 : i32
    %c0_i32_1 = arith.constant 0 : i32
    return %c0_i32, %c0_i32_0 : i32, i32
  }
  func.func @transform_5(%arg0: i32) -> (i32, i32) {
    %c0_i32 = arith.constant 0 : i32
    %c0_i32_0 = arith.constant 0 : i32
    return %arg0, %c0_i32 : i32, i32
  }
}

</mosaic_0001>

<llo_original>
// kernel: tpu_custom_call.1
$region0: #{tpu_custom_call.1}
  #allocation0 [shape = 'u32[]', space=smem, size = 0x4, offset = 0x4, fixed_abs, tag = 'smem constant byte address 0x4 - core index']
  #allocation1 [shape = 'u32[144,128]{1,0:T(1,128)}', space=vmem, size = 0x12000, scoped, tag = 'internal scratch']
  %s0 = inlined_call_operand.hbm [shape: bf16[16,2,8,256], index: 0, kind: input, shape index: {}]
  %s1 = inlined_call_operand.hbm [shape: bf16[2,256,128], index: 1, kind: input, shape index: {}]
  %s2 = inlined_call_operand.vmem [shape: f32[1,128], index: 2, kind: input, shape index: {}]
  %s3 = inlined_call_operand.vmem [shape: f32[1,128], index: 3, kind: input, shape index: {}]
  %s4 = inlined_call_operand.vmem [shape: f32[1,128], index: 4, kind: input, shape index: {}]
  %s5 = inlined_call_operand.hbm [shape: bf16[128,128], index: 5, kind: output, shape index: {}]
  %s6 = sld [smem:[#allocation0]]
  $region61: #{tpu_custom_call.1} parent=0
    _
  %s8 = ssub.s32 1, %s6
  %s9 = scalar_select 0, %s8, %s6
  $region1: #{tpu_custom_call.1} parent=0
    #allocation2 [shape = 'u8[131072]{0}', space=vmem, size = 0x20000, scoped, tag = 'input window, operand 0']
    #allocation3 [shape = 's32[2]{0}', space=sflag, size = 0x8, scoped, tag = 'scoped memory for tpu_custom_call.1']
    #allocation4 [shape = 's32[2]{0}', space=sflag, size = 0x8, scoped, tag = 'scoped memory for tpu_custom_call.1']
    #allocation5 [shape = 'u8[131072]{0}', space=vmem, size = 0x20000, scoped, tag = 'input window, operand 1, single buffered']
    #allocation6 [shape = 's32[1]{0}', space=sflag, size = 0x4, scoped, tag = 'scoped memory for tpu_custom_call.1']
    #allocation7 [shape = 'u8[32768]{0}', space=vmem, size = 0x8000, scoped, tag = 'output window, operand 0']
    %10 = vsyncpa [#allocation3], 0
    %s11 = scalar_lea.sflag [#allocation3], 1
    %12 = vsyncpa %s11, 0
    %13 = vsyncpa [#allocation6], 0
    %14 = vsyncpa [#allocation4], 0
    %s15 = scalar_lea.sflag [#allocation4], 1
    %16 = vsyncpa %s15, 0
    loop: start=0, step=1, limit=4
    $region2: #{tpu_custom_call.1} parent=1 // loop_pre_header
      _
    $region3: #{tpu_custom_call.1} parent=1 // loop_header
      %s18 = sphi 0, %s22
      %p19 = scmp.ge.s32.totalorder %s18, 4
      %s28 = sphi 0, %s30
      %s31 = sphi 0, %s28
      %s32 = sphi 0, %s31
      %s48 = sphi 0, %s32
      %s52 = sphi 0, %s52
      %s54 = sphi 0, %s52
      %s55 = sphi 0, %s54
      %s69 = sphi 0, %s55
      %s73 = sphi 0, %s73
      %s75 = sphi 0, %s73
      %s76 = sphi 0, %s75
      %s90 = sphi 0, %s76
      %s94 = sphi 0, %s94
      %s96 = sphi 0, %s94
      %s97 = sphi 0, %s96
      %s111 = sphi 0, %s97
      %s115 = sphi 0, %s115
      %s117 = sphi 0, %s115
      %s118 = sphi 0, %s117
      %s132 = sphi 0, %s118
      %s138 = sphi 0, %s140
      %s141 = sphi 0, %s138
      %s142 = sphi 0, %s141
      %s158 = sphi 0, %s142
    $region4: #{tpu_custom_call.1} parent=1 // loop_header_branch
      %21 = sbr.rel (%p19) target = $region8
    $region5: #{tpu_custom_call.1} parent=1 // loop_body
      %s23 = ssub.s32 %s18, 1
      %s24 = ssub.s32 %s18, 2
      %s25 = sadd.s32 %s18, 1
      %s26 = ssub.s32 %s18, %s25
      %p27 = scmp.eq.s32.totalorder %s26, 0
      %s29 = sadd.s32 %s28, 1
      %s30 = scalar_select %p27, %s28, %s29
      %p33 = pneg %p27
      %p34 = scmp.eq.s32.totalorder %s18, 1
      %p35 = por %p33, %p34
      %p36 = scmp.ne.s32.totalorder %s28, %s31
      %p37 = scmp.eq.s32.totalorder %s18, 0
      %p38 = por %p36, %p37
      %p39 = scmp.ne.s32.totalorder %s28, %s31
      %p40 = scmp.eq.s32.totalorder %s23, 1
      %p41 = por %p39, %p40
      %p42 = scmp.ne.s32.totalorder %s31, %s32
      %p43 = scmp.eq.s32.totalorder %s23, 0
      %p44 = por %p42, %p43
      %p45 = scmp.ne.s32.totalorder %s31, %s32
      %p46 = scmp.eq.s32.totalorder %s24, 1
      %p47 = por %p45, %p46
      %p49 = scmp.ne.s32.totalorder %s32, %s48
      %p50 = scmp.eq.s32.totalorder %s24, 0
      %p51 = por %p49, %p50
      %s53 = sadd.s32 %s52, 1
      %p56 = scmp.eq.s32.totalorder %s18, 1
      %p57 = scmp.ne.s32.totalorder %s52, %s54
      %p58 = scmp.eq.s32.totalorder %s18, 0
      %p59 = por %p57, %p58
      %p60 = scmp.ne.s32.totalorder %s52, %s54
      %p61 = scmp.eq.s32.totalorder %s23, 1
      %p62 = por %p60, %p61
      %p63 = scmp.ne.s32.totalorder %s54, %s55
      %p64 = scmp.eq.s32.totalorder %s23, 0
      %p65 = por %p63, %p64
      %p66 = scmp.ne.s32.totalorder %s54, %s55
      %p67 = scmp.eq.s32.totalorder %s24, 1
      %p68 = por %p66, %p67
      %p70 = scmp.ne.s32.totalorder %s55, %s69
      %p71 = scmp.eq.s32.totalorder %s24, 0
      %p72 = por %p70, %p71
      %s74 = sadd.s32 %s73, 1
      %p77 = scmp.eq.s32.totalorder %s18, 1
      %p78 = scmp.ne.s32.totalorder %s73, %s75
      %p79 = scmp.eq.s32.totalorder %s18, 0
      %p80 = por %p78, %p79
      %p81 = scmp.ne.s32.totalorder %s73, %s75
      %p82 = scmp.eq.s32.totalorder %s23, 1
      %p83 = por %p81, %p82
      %p84 = scmp.ne.s32.totalorder %s75, %s76
      %p85 = scmp.eq.s32.totalorder %s23, 0
      %p86 = por %p84, %p85
      %p87 = scmp.ne.s32.totalorder %s75, %s76
      %p88 = scmp.eq.s32.totalorder %s24, 1
      %p89 = por %p87, %p88
      %p91 = scmp.ne.s32.totalorder %s76, %s90
      %p92 = scmp.eq.s32.totalorder %s24, 0
      %p93 = por %p91, %p92
      %s95 = sadd.s32 %s94, 1
      %p98 = scmp.eq.s32.totalorder %s18, 1
      %p99 = scmp.ne.s32.totalorder %s94, %s96
      %p100 = scmp.eq.s32.totalorder %s18, 0
      %p101 = por %p99, %p100
      %p102 = scmp.ne.s32.totalorder %s94, %s96
      %p103 = scmp.eq.s32.totalorder %s23, 1
      %p104 = por %p102, %p103
      %p105 = scmp.ne.s32.totalorder %s96, %s97
      %p106 = scmp.eq.s32.totalorder %s23, 0
      %p107 = por %p105, %p106
      %p108 = scmp.ne.s32.totalorder %s96, %s97
      %p109 = scmp.eq.s32.totalorder %s24, 1
      %p110 = por %p108, %p109
      %p112 = scmp.ne.s32.totalorder %s97, %s111
      %p113 = scmp.eq.s32.totalorder %s24, 0
      %p114 = por %p112, %p113
      %s116 = sadd.s32 %s115, 1
      %p119 = scmp.eq.s32.totalorder %s18, 1
      %p120 = scmp.ne.s32.totalorder %s115, %s117
      %p121 = scmp.eq.s32.totalorder %s18, 0
      %p122 = por %p120, %p121
      %p123 = scmp.ne.s32.totalorder %s115, %s117
      %p124 = scmp.eq.s32.totalorder %s23, 1
      %p125 = por %p123, %p124
      %p126 = scmp.ne.s32.totalorder %s117, %s118
      %p127 = scmp.eq.s32.totalorder %s23, 0
      %p128 = por %p126, %p127
      %p129 = scmp.ne.s32.totalorder %s117, %s118
      %p130 = scmp.eq.s32.totalorder %s24, 1
      %p131 = por %p129, %p130
      %p133 = scmp.ne.s32.totalorder %s118, %s132
      %p134 = scmp.eq.s32.totalorder %s24, 0
      %p135 = por %p133, %p134
      %s136 = ssub.s32 %s18, %s25
      %p137 = scmp.eq.s32.totalorder %s136, 0
      %s139 = sadd.s32 %s138, 1
      %s140 = scalar_select %p137, %s138, %s139
      %p143 = pneg %p137
      %p144 = scmp.eq.s32.totalorder %s18, 1
      %p145 = por %p143, %p144
      %p146 = scmp.ne.s32.totalorder %s138, %s141
      %p147 = scmp.eq.s32.totalorder %s18, 0
      %p148 = por %p146, %p147
      %p149 = scmp.ne.s32.totalorder %s138, %s141
      %p150 = scmp.eq.s32.totalorder %s23, 1
      %p151 = por %p149, %p150
      %p152 = scmp.ne.s32.totalorder %s141, %s142
      %p153 = scmp.eq.s32.totalorder %s23, 0
      %p154 = por %p152, %p153
      %p155 = scmp.ne.s32.totalorder %s141, %s142
      %p156 = scmp.eq.s32.totalorder %s24, 1
      %p157 = por %p155, %p156
      %p159 = scmp.ne.s32.totalorder %s142, %s158
      %p160 = scmp.eq.s32.totalorder %s24, 0
      %p161 = por %p159, %p160
      %p162 = scmp.le.s32.totalorder 1, %s18
      %p163 = scmp.lt.s32.totalorder %s18, 3
      %p164 = pnand %p162, %p163
      %p165 = pneg %p164
      // Predicated region
      $region9: #{tpu_custom_call.1} parent=5 // pred_check
        _
      $region10: #{tpu_custom_call.1} parent=5 // pred_check_branch
        %167 = sbr.rel (%p164) target = $region12
      $region11: #{tpu_custom_call.1} parent=5 // pred_region
        %s168 = ssub.s32 %s18, 1
        // Predicated region
        $region13: #{tpu_custom_call.1} parent=11 // pred_check
          %p169 = pneg %p65
        $region14: #{tpu_custom_call.1} parent=11 // pred_check_branch
          %171 = sbr.rel (%p169) target = $region16
        $region15: #{tpu_custom_call.1} parent=11 // pred_region
          %s173 = ssub.s32 4096, 4096
          %174 = vsyncadd [#allocation6], %s173
          %s175 = sshll.u32 [#allocation5], 4
          %s176 = int_to_ptr.vmem [resolvable:$true] %s175
          %181 = dma.hbm_to_vmem [thread:$0]  %s1, 4096, %s176, [#allocation6], 64, 64, 4
        $region16: #{tpu_custom_call.1} parent=11 // pred_fallthru
          _
        // Predicated region
        $region17: #{tpu_custom_call.1} parent=11 // pred_check
          %p182 = pneg %p86
        $region18: #{tpu_custom_call.1} parent=11 // pred_check_branch
          %184 = sbr.rel (%p182) target = $region20
        $region19: #{tpu_custom_call.1} parent=11 // pred_region
          _
        $region20: #{tpu_custom_call.1} parent=11 // pred_fallthru
          _
        // Predicated region
        $region21: #{tpu_custom_call.1} parent=11 // pred_check
          %p185 = pneg %p107
        $region22: #{tpu_custom_call.1} parent=11 // pred_check_branch
          %187 = sbr.rel (%p185) target = $region24
        $region23: #{tpu_custom_call.1} parent=11 // pred_region
          _
        $region24: #{tpu_custom_call.1} parent=11 // pred_fallthru
          _
        // Predicated region
        $region25: #{tpu_custom_call.1} parent=11 // pred_check
          %p188 = pneg %p128
        $region26: #{tpu_custom_call.1} parent=11 // pred_check_branch
          %190 = sbr.rel (%p188) target = $region28
        $region27: #{tpu_custom_call.1} parent=11 // pred_region
          _
        $region28: #{tpu_custom_call.1} parent=11 // pred_fallthru
          _
      $region12: #{tpu_custom_call.1} parent=5 // pred_fallthru
        _
      %p191 = scmp.lt.s32.totalorder %s18, 2
      // Predicated region
      $region29: #{tpu_custom_call.1} parent=5 // pred_check
        %p192 = pneg %p191
      $region30: #{tpu_custom_call.1} parent=5 // pred_check_branch
        %194 = sbr.rel (%p192) target = $region32
      $region31: #{tpu_custom_call.1} parent=5 // pred_region
        // Predicated region
        $region33: #{tpu_custom_call.1} parent=31 // pred_check
          %p195 = pneg %p38
        $region34: #{tpu_custom_call.1} parent=31 // pred_check_branch
          %197 = sbr.rel (%p195) target = $region36
        $region35: #{tpu_custom_call.1} parent=31 // pred_region
          %s198 = sand.u32 %s28, 1
          %s199 = scalar_lea.sflag [#allocation3], %s198
          %s200 = sand.u32 %s28, 1
          %s201 = smul.addr %s200, 128
          %s202 = scalar_lea.vmem [#allocation2], %s201
          %s203 = smul.u32 8, %s18
          %s205 = ssub.s32 2048, 2048
          %206 = vsyncadd %s199, %s205
          %s207 = smul.addr %s203, 4
          %s208 = smul.addr %s207, 64
          %s209 = scalar_lea.hbm %s0, %s208
          %s210 = sshll.u32 %s202, 4
          %s211 = int_to_ptr.vmem [resolvable:$true] %s210
          %216 = dma.hbm_to_vmem [thread:$0]  %s209, 2048, %s211, %s199, 128, 128, 8
        $region36: #{tpu_custom_call.1} parent=31 // pred_fallthru
          _
      $region32: #{tpu_custom_call.1} parent=5 // pred_fallthru
        _
      %p217 = scmp.le.s32.totalorder 1, %s18
      %p218 = scmp.lt.s32.totalorder %s18, 3
      %p219 = pnand %p217, %p218
      %p220 = pneg %p219
      // Predicated region
      $region37: #{tpu_custom_call.1} parent=5 // pred_check
        _
      $region38: #{tpu_custom_call.1} parent=5 // pred_check_branch
        %222 = sbr.rel (%p219) target = $region40
      $region39: #{tpu_custom_call.1} parent=5 // pred_region
        %s223 = ssub.s32 %s18, 1
        %s224 = sand.u32 %s31, 1
        %s225 = scalar_lea.sflag [#allocation3], %s224
        %s226 = sand.u32 %s31, 1
        %s227 = smul.addr %s226, 128
        %s228 = scalar_lea.vmem [#allocation2], %s227
        // Predicated region
        $region41: #{tpu_custom_call.1} parent=39 // pred_check
          %p229 = pneg %p44
        $region42: #{tpu_custom_call.1} parent=39 // pred_check_branch
          %231 = sbr.rel (%p229) target = $region44
        $region43: #{tpu_custom_call.1} parent=39 // pred_region
          %232 = dma.done %s225, 2048
        $region44: #{tpu_custom_call.1} parent=39 // pred_fallthru
          _
        // Predicated region
        $region45: #{tpu_custom_call.1} parent=39 // pred_check
          %p233 = pneg %p65
        $region46: #{tpu_custom_call.1} parent=39 // pred_check_branch
          %235 = sbr.rel (%p233) target = $region48
        $region47: #{tpu_custom_call.1} parent=39 // pred_region
          %236 = dma.done [#allocation6], 4096
        $region48: #{tpu_custom_call.1} parent=39 // pred_fallthru
          _
        %s237 = sand.u32 %s31, 1
        %s238 = scalar_lea.sflag [#allocation3], %s237
        %s239 = sand.u32 %s31, 1
        %s240 = smul.addr %s239, 128
        %s241 = scalar_lea.vmem [#allocation2], %s240
        %p242 = pneg %p44
        %p243 = pneg %p41
        %p244 = pneg %p65
        %p245 = pneg %p62
        %p246 = pneg %p86
        %p247 = pneg %p83
        %p248 = pneg %p107
        %p249 = pneg %p104
        %p250 = pneg %p128
        %p251 = pneg %p125
        %p252 = pneg %p154
        %p253 = pneg %p151
        %s254 = sand.u32 %s141, 1
        %s255 = scalar_lea.sflag [#allocation4], %s254
        %s256 = sand.u32 %s141, 1
        %s257 = smul.addr %s256, 32
        %s258 = scalar_lea.vmem [#allocation7], %s257
        %s259 = smul.u32 8, %s23
        %s260 = smul.u32 8, %s23
        %v262 = vld [vmem:[%s228] sm:$0xff]
        %v263 = vld [vmem:[%s228 + $0x8] sm:$0xff]
        %v264 = vld [vmem:[%s228 + $0x10] sm:$0xff]
        %v265 = vld [vmem:[%s228 + $0x18] sm:$0xff]
        %v266 = vld [vmem:[%s228 + $0x20] sm:$0xff]
        %v267 = vld [vmem:[%s228 + $0x28] sm:$0xff]
        %v268 = vld [vmem:[%s228 + $0x30] sm:$0xff]
        %v269 = vld [vmem:[%s228 + $0x38] sm:$0xff]
        %v270 = vld [vmem:[%s228 + $0x40] sm:$0xff]
        %v271 = vld [vmem:[%s228 + $0x48] sm:$0xff]
        %v272 = vld [vmem:[%s228 + $0x50] sm:$0xff]
        %v273 = vld [vmem:[%s228 + $0x58] sm:$0xff]
        %v274 = vld [vmem:[%s228 + $0x60] sm:$0xff]
        %v275 = vld [vmem:[%s228 + $0x68] sm:$0xff]
        %v276 = vld [vmem:[%s228 + $0x70] sm:$0xff]
        %v277 = vld [vmem:[%s228 + $0x78] sm:$0xff]
        %v278 = vld [vmem:[#allocation5] sm:$0xf]
        %v279 = vld [vmem:[#allocation5 + $0x4] sm:$0xf]
        %v280 = vld [vmem:[#allocation5 + $0x8] sm:$0xf]
        %v281 = vld [vmem:[#allocation5 + $0xc] sm:$0xf]
        %v282 = vld [vmem:[#allocation5 + $0x10] sm:$0xf]
        %v283 = vld [vmem:[#allocation5 + $0x14] sm:$0xf]
        %v284 = vld [vmem:[#allocation5 + $0x18] sm:$0xf]
        %v285 = vld [vmem:[#allocation5 + $0x1c] sm:$0xf]
        %v286 = vld [vmem:[#allocation5 + $0x20] sm:$0xf]
        %v287 = vld [vmem:[#allocation5 + $0x24] sm:$0xf]
        %v288 = vld [vmem:[#allocation5 + $0x28] sm:$0xf]
        %v289 = vld [vmem:[#allocation5 + $0x2c] sm:$0xf]
        %v290 = vld [vmem:[#allocation5 + $0x30] sm:$0xf]
        %v291 = vld [vmem:[#allocation5 + $0x34] sm:$0xf]
        %v292 = vld [vmem:[#allocation5 + $0x38] sm:$0xf]
        %v293 = vld [vmem:[#allocation5 + $0x3c] sm:$0xf]
        %v294 = vld [vmem:[#allocation5 + $0x40] sm:$0xf]
        %v295 = vld [vmem:[#allocation5 + $0x44] sm:$0xf]
        %v296 = vld [vmem:[#allocation5 + $0x48] sm:$0xf]
        %v297 = vld [vmem:[#allocation5 + $0x4c] sm:$0xf]
        %v298 = vld [vmem:[#allocation5 + $0x50] sm:$0xf]
        %v299 = vld [vmem:[#allocation5 + $0x54] sm:$0xf]
        %v300 = vld [vmem:[#allocation5 + $0x58] sm:$0xf]
        %v301 = vld [vmem:[#allocation5 + $0x5c] sm:$0xf]
        %v302 = vld [vmem:[#allocation5 + $0x60] sm:$0xf]
        %v303 = vld [vmem:[#allocation5 + $0x64] sm:$0xf]
        %v304 = vld [vmem:[#allocation5 + $0x68] sm:$0xf]
        %v305 = vld [vmem:[#allocation5 + $0x6c] sm:$0xf]
        %v306 = vld [vmem:[#allocation5 + $0x70] sm:$0xf]
        %v307 = vld [vmem:[#allocation5 + $0x74] sm:$0xf]
        %v308 = vld [vmem:[#allocation5 + $0x78] sm:$0xf]
        %v309 = vld [vmem:[#allocation5 + $0x7c] sm:$0xf]
        %s310 = scalar_lea.vmem [#allocation5], 128
        %v311 = vld [vmem:[%s310] sm:$0xf]
        %v312 = vld [vmem:[%s310 + $0x4] sm:$0xf]
        %v313 = vld [vmem:[%s310 + $0x8] sm:$0xf]
        %v314 = vld [vmem:[%s310 + $0xc] sm:$0xf]
        %v315 = vld [vmem:[%s310 + $0x10] sm:$0xf]
        %v316 = vld [vmem:[%s310 + $0x14] sm:$0xf]
        %v317 = vld [vmem:[%s310 + $0x18] sm:$0xf]
        %v318 = vld [vmem:[%s310 + $0x1c] sm:$0xf]
        %v319 = vld [vmem:[%s310 + $0x20] sm:$0xf]
        %v320 = vld [vmem:[%s310 + $0x24] sm:$0xf]
        %v321 = vld [vmem:[%s310 + $0x28] sm:$0xf]
        %v322 = vld [vmem:[%s310 + $0x2c] sm:$0xf]
        %v323 = vld [vmem:[%s310 + $0x30] sm:$0xf]
        %v324 = vld [vmem:[%s310 + $0x34] sm:$0xf]
        %v325 = vld [vmem:[%s310 + $0x38] sm:$0xf]
        %v326 = vld [vmem:[%s310 + $0x3c] sm:$0xf]
        %v327 = vld [vmem:[%s310 + $0x40] sm:$0xf]
        %v328 = vld [vmem:[%s310 + $0x44] sm:$0xf]
        %v329 = vld [vmem:[%s310 + $0x48] sm:$0xf]
        %v330 = vld [vmem:[%s310 + $0x4c] sm:$0xf]
        %v331 = vld [vmem:[%s310 + $0x50] sm:$0xf]
        %v332 = vld [vmem:[%s310 + $0x54] sm:$0xf]
        %v333 = vld [vmem:[%s310 + $0x58] sm:$0xf]
        %v334 = vld [vmem:[%s310 + $0x5c] sm:$0xf]
        %v335 = vld [vmem:[%s310 + $0x60] sm:$0xf]
        %v336 = vld [vmem:[%s310 + $0x64] sm:$0xf]
        %v337 = vld [vmem:[%s310 + $0x68] sm:$0xf]
        %v338 = vld [vmem:[%s310 + $0x6c] sm:$0xf]
        %v339 = vld [vmem:[%s310 + $0x70] sm:$0xf]
        %v340 = vld [vmem:[%s310 + $0x74] sm:$0xf]
        %v341 = vld [vmem:[%s310 + $0x78] sm:$0xf]
        %v342 = vld [vmem:[%s310 + $0x7c] sm:$0xf]
        %v351 = vunpack.c.l.b16 %v263
        %v352 = vunpack.c.h.b16 %v263
        %v353 = vunpack.c.l.b16 %v265
        %v354 = vunpack.c.h.b16 %v265
        %v355 = vunpack.c.l.b16 %v267
        %v356 = vunpack.c.h.b16 %v267
        %v357 = vunpack.c.l.b16 %v269
        %v358 = vunpack.c.h.b16 %v269
        %v359 = vunpack.c.l.b16 %v271
        %v360 = vunpack.c.h.b16 %v271
        %v361 = vunpack.c.l.b16 %v273
        %v362 = vunpack.c.h.b16 %v273
        %v363 = vunpack.c.l.b16 %v275
        %v364 = vunpack.c.h.b16 %v275
        %v365 = vunpack.c.l.b16 %v277
        %v366 = vunpack.c.h.b16 %v277
        %v367 = vpack.c.b16 %v353, %v351
        %v368 = vpack.c.b16 %v354, %v352
        %v369 = vpack.c.b16 %v357, %v355
        %v370 = vpack.c.b16 %v358, %v356
        %v371 = vpack.c.b16 %v361, %v359
        %v372 = vpack.c.b16 %v362, %v360
        %v373 = vpack.c.b16 %v365, %v363
        %v374 = vpack.c.b16 %v366, %v364
        %v415 = vunpack.c.l.b16 %v311
        %v416 = vunpack.c.l.b16 %v312
        %v417 = vunpack.c.l.b16 %v313
        %v418 = vunpack.c.l.b16 %v314
        %v419 = vunpack.c.l.b16 %v315
        %v420 = vunpack.c.l.b16 %v316
        %v421 = vunpack.c.l.b16 %v317
        %v422 = vunpack.c.l.b16 %v318
        %v423 = vunpack.c.l.b16 %v319
        %v424 = vunpack.c.l.b16 %v320
        %v425 = vunpack.c.l.b16 %v321
        %v426 = vunpack.c.l.b16 %v322
        %v427 = vunpack.c.l.b16 %v323
        %v428 = vunpack.c.l.b16 %v324
        %v429 = vunpack.c.l.b16 %v325
        %v430 = vunpack.c.l.b16 %v326
        %v431 = vunpack.c.l.b16 %v327
        %v432 = vunpack.c.l.b16 %v328
        %v433 = vunpack.c.l.b16 %v329
        %v434 = vunpack.c.l.b16 %v330
        %v435 = vunpack.c.l.b16 %v331
        %v436 = vunpack.c.l.b16 %v332
        %v437 = vunpack.c.l.b16 %v333
        %v438 = vunpack.c.l.b16 %v334
        %v439 = vunpack.c.l.b16 %v335
        %v440 = vunpack.c.l.b16 %v336
        %v441 = vunpack.c.l.b16 %v337
        %v442 = vunpack.c.l.b16 %v338
        %v443 = vunpack.c.l.b16 %v339
        %v444 = vunpack.c.l.b16 %v340
        %v445 = vunpack.c.l.b16 %v341
        %v446 = vunpack.c.l.b16 %v342
        %v447 = vpack.c.b16 %v416, %v415
        %v448 = vpack.c.b16 %v418, %v417
        %v449 = vpack.c.b16 %v420, %v419
        %v450 = vpack.c.b16 %v422, %v421
        %v451 = vpack.c.b16 %v424, %v423
        %v452 = vpack.c.b16 %v426, %v425
        %v453 = vpack.c.b16 %v428, %v427
        %v454 = vpack.c.b16 %v430, %v429
        %v455 = vpack.c.b16 %v432, %v431
        %v456 = vpack.c.b16 %v434, %v433
        %v457 = vpack.c.b16 %v436, %v435
        %v458 = vpack.c.b16 %v438, %v437
        %v459 = vpack.c.b16 %v440, %v439
        %v460 = vpack.c.b16 %v442, %v441
        %v461 = vpack.c.b16 %v444, %v443
        %v462 = vpack.c.b16 %v446, %v445
        %479 = vmatprep.subr.bf16.mxu0 0
        %480 = vmatpush1.bf16.msra.mxu0 %v447
        %481 = vmatprep.subr.bf16.mxu0 0
        %482 = vmatpush1.bf16.msra.mxu0 %v448
        %483 = vmatprep.subr.bf16.mxu0 0
        %484 = vmatpush1.bf16.msra.mxu0 %v449
        %485 = vmatprep.subr.bf16.mxu0 0
        %486 = vmatpush1.bf16.msra.mxu0 %v450
        %487 = vmatprep.subr.bf16.mxu0 0
        %488 = vmatpush1.bf16.msra.mxu0 %v451
        %489 = vmatprep.subr.bf16.mxu0 0
        %490 = vmatpush1.bf16.msra.mxu0 %v452
        %491 = vmatprep.subr.bf16.mxu0 0
        %492 = vmatpush1.bf16.msra.mxu0 %v453
        %493 = vmatprep.subr.bf16.mxu0 0
        %494 = vmatpush1.bf16.msra.mxu0 %v454
        %495 = vmatprep.subr.bf16.mxu0 0
        %496 = vmatpush1.bf16.msra.mxu0 %v455
        %497 = vmatprep.subr.bf16.mxu0 0
        %498 = vmatpush1.bf16.msra.mxu0 %v456
        %499 = vmatprep.subr.bf16.mxu0 0
        %500 = vmatpush1.bf16.msra.mxu0 %v457
        %501 = vmatprep.subr.bf16.mxu0 0
        %502 = vmatpush1.bf16.msra.mxu0 %v458
        %503 = vmatprep.subr.bf16.mxu0 0
        %504 = vmatpush1.bf16.msra.mxu0 %v459
        %505 = vmatprep.subr.bf16.mxu0 0
        %506 = vmatpush1.bf16.msra.mxu0 %v460
        %507 = vmatprep.subr.bf16.mxu0 0
        %508 = vmatpush1.bf16.msra.mxu0 %v461
        %509 = vmatprep.subr.bf16.mxu0 0
        %510 = vmatpush1.bf16.msra.mxu0 %v462
        %511 = vmatprep.mubr.bf16.mxu0 %v368
        %512 = vmatmul.mubr.bf16.gmra.mrb[0].mxu0 %v367
        %v513 = vpop.f32.mrb[0].mxu0
        %v514 = vadd.f32 0.0, %v513
        %v515 = vpop.f32.mrb[0].mxu0
        %v516 = vpop.f32.mrb[0].mxu0
        %v517 = vadd.f32 0.0, %v516
        %v518 = vpop.f32.mrb[0].mxu0
        %519 = vmatprep.mubr.bf16.mxu0 %v370
        %520 = vmatmul.mubr.bf16.gmra.mrb[0].mxu0 %v369
        %v521 = vpop.f32.mrb[0].mxu0
        %v522 = vadd.f32 0.0, %v521
        %v523 = vpop.f32.mrb[0].mxu0
        %v524 = vpop.f32.mrb[0].mxu0
        %v525 = vadd.f32 0.0, %v524
        %v526 = vpop.f32.mrb[0].mxu0
        %527 = vmatprep.mubr.bf16.mxu0 %v372
        %528 = vmatmul.mubr.bf16.gmra.mrb[0].mxu0 %v371
        %v529 = vpop.f32.mrb[0].mxu0
        %v530 = vadd.f32 0.0, %v529
        %v531 = vpop.f32.mrb[0].mxu0
        %v532 = vpop.f32.mrb[0].mxu0
        %v533 = vadd.f32 0.0, %v532
        %v534 = vpop.f32.mrb[0].mxu0
        %535 = vmatprep.mubr.bf16.mxu0 %v374
        %536 = vmatmul.mubr.bf16.gmra.mrb[0].mxu0 %v373
        %v537 = vpop.f32.mrb[0].mxu0
        %v538 = vadd.f32 0.0, %v537
        %v539 = vpop.f32.mrb[0].mxu0
        %v540 = vpop.f32.mrb[0].mxu0
        %v541 = vadd.f32 0.0, %v540
        %v542 = vpop.f32.mrb[0].mxu0
        %543 = vdwg.mxu0
        %v552 = vunpack.c.l.b16 %v262
        %v553 = vunpack.c.h.b16 %v262
        %v554 = vunpack.c.l.b16 %v264
        %v555 = vunpack.c.h.b16 %v264
        %v556 = vunpack.c.l.b16 %v266
        %v557 = vunpack.c.h.b16 %v266
        %v558 = vunpack.c.l.b16 %v268
        %v559 = vunpack.c.h.b16 %v268
        %v560 = vunpack.c.l.b16 %v270
        %v561 = vunpack.c.h.b16 %v270
        %v562 = vunpack.c.l.b16 %v272
        %v563 = vunpack.c.h.b16 %v272
        %v564 = vunpack.c.l.b16 %v274
        %v565 = vunpack.c.h.b16 %v274
        %v566 = vunpack.c.l.b16 %v276
        %v567 = vunpack.c.h.b16 %v276
        %v568 = vpack.c.b16 %v554, %v552
        %v569 = vpack.c.b16 %v555, %v553
        %v570 = vpack.c.b16 %v558, %v556
        %v571 = vpack.c.b16 %v559, %v557
        %v572 = vpack.c.b16 %v562, %v560
        %v573 = vpack.c.b16 %v563, %v561
        %v574 = vpack.c.b16 %v566, %v564
        %v575 = vpack.c.b16 %v567, %v565
        %v616 = vunpack.c.l.b16 %v278
        %v617 = vunpack.c.l.b16 %v279
        %v618 = vunpack.c.l.b16 %v280
        %v619 = vunpack.c.l.b16 %v281
        %v620 = vunpack.c.l.b16 %v282
        %v621 = vunpack.c.l.b16 %v283
        %v622 = vunpack.c.l.b16 %v284
        %v623 = vunpack.c.l.b16 %v285
        %v624 = vunpack.c.l.b16 %v286
        %v625 = vunpack.c.l.b16 %v287
        %v626 = vunpack.c.l.b16 %v288
        %v627 = vunpack.c.l.b16 %v289
        %v628 = vunpack.c.l.b16 %v290
        %v629 = vunpack.c.l.b16 %v291
        %v630 = vunpack.c.l.b16 %v292
        %v631 = vunpack.c.l.b16 %v293
        %v632 = vunpack.c.l.b16 %v294
        %v633 = vunpack.c.l.b16 %v295
        %v634 = vunpack.c.l.b16 %v296
        %v635 = vunpack.c.l.b16 %v297
        %v636 = vunpack.c.l.b16 %v298
        %v637 = vunpack.c.l.b16 %v299
        %v638 = vunpack.c.l.b16 %v300
        %v639 = vunpack.c.l.b16 %v301
        %v640 = vunpack.c.l.b16 %v302
        %v641 = vunpack.c.l.b16 %v303
        %v642 = vunpack.c.l.b16 %v304
        %v643 = vunpack.c.l.b16 %v305
        %v644 = vunpack.c.l.b16 %v306
        %v645 = vunpack.c.l.b16 %v307
        %v646 = vunpack.c.l.b16 %v308
        %v647 = vunpack.c.l.b16 %v309
        %v648 = vpack.c.b16 %v617, %v616
        %v649 = vpack.c.b16 %v619, %v618
        %v650 = vpack.c.b16 %v621, %v620
        %v651 = vpack.c.b16 %v623, %v622
        %v652 = vpack.c.b16 %v625, %v624
        %v653 = vpack.c.b16 %v627, %v626
        %v654 = vpack.c.b16 %v629, %v628
        %v655 = vpack.c.b16 %v631, %v630
        %v656 = vpack.c.b16 %v633, %v632
        %v657 = vpack.c.b16 %v635, %v634
        %v658 = vpack.c.b16 %v637, %v636
        %v659 = vpack.c.b16 %v639, %v638
        %v660 = vpack.c.b16 %v641, %v640
        %v661 = vpack.c.b16 %v643, %v642
        %v662 = vpack.c.b16 %v645, %v644
        %v663 = vpack.c.b16 %v647, %v646
        %680 = vmatprep.subr.bf16.mxu0 0
        %681 = vmatpush1.bf16.msra.mxu0 %v648
        %682 = vmatprep.subr.bf16.mxu0 0
        %683 = vmatpush1.bf16.msra.mxu0 %v649
        %684 = vmatprep.subr.bf16.mxu0 0
        %685 = vmatpush1.bf16.msra.mxu0 %v650
        %686 = vmatprep.subr.bf16.mxu0 0
        %687 = vmatpush1.bf16.msra.mxu0 %v651
        %688 = vmatprep.subr.bf16.mxu0 0
        %689 = vmatpush1.bf16.msra.mxu0 %v652
        %690 = vmatprep.subr.bf16.mxu0 0
        %691 = vmatpush1.bf16.msra.mxu0 %v653
        %692 = vmatprep.subr.bf16.mxu0 0
        %693 = vmatpush1.bf16.msra.mxu0 %v654
        %694 = vmatprep.subr.bf16.mxu0 0
        %695 = vmatpush1.bf16.msra.mxu0 %v655
        %696 = vmatprep.subr.bf16.mxu0 0
        %697 = vmatpush1.bf16.msra.mxu0 %v656
        %698 = vmatprep.subr.bf16.mxu0 0
        %699 = vmatpush1.bf16.msra.mxu0 %v657
        %700 = vmatprep.subr.bf16.mxu0 0
        %701 = vmatpush1.bf16.msra.mxu0 %v658
        %702 = vmatprep.subr.bf16.mxu0 0
        %703 = vmatpush1.bf16.msra.mxu0 %v659
        %704 = vmatprep.subr.bf16.mxu0 0
        %705 = vmatpush1.bf16.msra.mxu0 %v660
        %706 = vmatprep.subr.bf16.mxu0 0
        %707 = vmatpush1.bf16.msra.mxu0 %v661
        %708 = vmatprep.subr.bf16.mxu0 0
        %709 = vmatpush1.bf16.msra.mxu0 %v662
        %710 = vmatprep.subr.bf16.mxu0 0
        %711 = vmatpush1.bf16.msra.mxu0 %v663
        %712 = vmatprep.mubr.bf16.mxu0 %v569
        %713 = vmatmul.mubr.bf16.gmra.mrb[0].mxu0 %v568
        %v714 = vpop.f32.mrb[0].mxu0
        %v715 = vadd.f32 %v514, %v714
        %v716 = vpop.f32.mrb[0].mxu0
        %v717 = vpop.f32.mrb[0].mxu0
        %v718 = vadd.f32 %v517, %v717
        %v719 = vpop.f32.mrb[0].mxu0
        %720 = vmatprep.mubr.bf16.mxu0 %v571
        %721 = vmatmul.mubr.bf16.gmra.mrb[0].mxu0 %v570
        %v722 = vpop.f32.mrb[0].mxu0
        %v723 = vadd.f32 %v522, %v722
        %v724 = vpop.f32.mrb[0].mxu0
        %v725 = vpop.f32.mrb[0].mxu0
        %v726 = vadd.f32 %v525, %v725
        %v727 = vpop.f32.mrb[0].mxu0
        %728 = vmatprep.mubr.bf16.mxu0 %v573
        %729 = vmatmul.mubr.bf16.gmra.mrb[0].mxu0 %v572
        %v730 = vpop.f32.mrb[0].mxu0
        %v731 = vadd.f32 %v530, %v730
        %v732 = vpop.f32.mrb[0].mxu0
        %v733 = vpop.f32.mrb[0].mxu0
        %v734 = vadd.f32 %v533, %v733
        %v735 = vpop.f32.mrb[0].mxu0
        %736 = vmatprep.mubr.bf16.mxu0 %v575
        %737 = vmatmul.mubr.bf16.gmra.mrb[0].mxu0 %v574
        %v738 = vpop.f32.mrb[0].mxu0
        %v739 = vadd.f32 %v538, %v738
        %v740 = vpop.f32.mrb[0].mxu0
        %v741 = vpop.f32.mrb[0].mxu0
        %v742 = vadd.f32 %v541, %v741
        %v743 = vpop.f32.mrb[0].mxu0
        %744 = vdwg.mxu0
        %v745 = vld [vmem:[%s2] sm:$0x1]
        %v747 = vlaneseq
        %v748 = vshrl.u32 %v747, 7
        %v749 = vsub.s32 0, %v748
        %v750 = vrot.slane %v745, %v749
        %v752 = vadd.f32 %v715, %v750
        %v753 = vadd.f32 %v718, %v750
        %v754 = vadd.f32 %v723, %v750
        %v755 = vadd.f32 %v726, %v750
        %v756 = vadd.f32 %v731, %v750
        %v757 = vadd.f32 %v734, %v750
        %v758 = vadd.f32 %v739, %v750
        %v759 = vadd.f32 %v742, %v750
        %760 = vadd.xlane.f32.xlu0 %v752
        %v761 = vpop.xlane.xlu0 %760
        %762 = vadd.xlane.f32.xlu0 %v753
        %v763 = vpop.xlane.xlu0 %762
        %764 = vadd.xlane.f32.xlu0 %v754
        %v765 = vpop.xlane.xlu0 %764
        %766 = vadd.xlane.f32.xlu0 %v755
        %v767 = vpop.xlane.xlu0 %766
        %768 = vadd.xlane.f32.xlu0 %v756
        %v769 = vpop.xlane.xlu0 %768
        %770 = vadd.xlane.f32.xlu0 %v757
        %v771 = vpop.xlane.xlu0 %770
        %772 = vadd.xlane.f32.xlu0 %v758
        %v773 = vpop.xlane.xlu0 %772
        %774 = vadd.xlane.f32.xlu0 %v759
        %v775 = vpop.xlane.xlu0 %774
        %v776 = vrcp.pop 128.0
        %v777 = vmul.f32 %v761, %v776
        %v778 = vmul.f32 %v763, %v776
        %v779 = vmul.f32 %v765, %v776
        %v780 = vmul.f32 %v767, %v776
        %v781 = vmul.f32 %v769, %v776
        %v782 = vmul.f32 %v771, %v776
        %v783 = vmul.f32 %v773, %v776
        %v784 = vmul.f32 %v775, %v776
        %v785 = vsub.f32 %v752, %v777
        %v786 = vsub.f32 %v753, %v778
        %v787 = vsub.f32 %v754, %v779
        %v788 = vsub.f32 %v755, %v780
        %v789 = vsub.f32 %v756, %v781
        %v790 = vsub.f32 %v757, %v782
        %v791 = vsub.f32 %v758, %v783
        %v792 = vsub.f32 %v759, %v784
        %v793 = vmul.f32 %v785, %v785
        %v794 = vmul.f32 %v786, %v786
        %v795 = vmul.f32 %v787, %v787
        %v796 = vmul.f32 %v788, %v788
        %v797 = vmul.f32 %v789, %v789
        %v798 = vmul.f32 %v790, %v790
        %v799 = vmul.f32 %v791, %v791
        %v800 = vmul.f32 %v792, %v792
        %801 = vadd.xlane.f32.xlu0 %v793
        %v802 = vpop.xlane.xlu0 %801
        %803 = vadd.xlane.f32.xlu0 %v794
        %v804 = vpop.xlane.xlu0 %803
        %805 = vadd.xlane.f32.xlu0 %v795
        %v806 = vpop.xlane.xlu0 %805
        %807 = vadd.xlane.f32.xlu0 %v796
        %v808 = vpop.xlane.xlu0 %807
        %809 = vadd.xlane.f32.xlu0 %v797
        %v810 = vpop.xlane.xlu0 %809
        %811 = vadd.xlane.f32.xlu0 %v798
        %v812 = vpop.xlane.xlu0 %811
        %813 = vadd.xlane.f32.xlu0 %v799
        %v814 = vpop.xlane.xlu0 %813
        %815 = vadd.xlane.f32.xlu0 %v800
        %v816 = vpop.xlane.xlu0 %815
        %v817 = vmul.f32 %v802, %v776
        %v818 = vmul.f32 %v804, %v776
        %v819 = vmul.f32 %v806, %v776
        %v820 = vmul.f32 %v808, %v776
        %v821 = vmul.f32 %v810, %v776
        %v822 = vmul.f32 %v812, %v776
        %v823 = vmul.f32 %v814, %v776
        %v824 = vmul.f32 %v816, %v776
        %v825 = vadd.f32 %v817, 1e-05
        %v826 = vadd.f32 %v818, 1e-05
        %v827 = vadd.f32 %v819, 1e-05
        %v828 = vadd.f32 %v820, 1e-05
        %v829 = vadd.f32 %v821, 1e-05
        %v830 = vadd.f32 %v822, 1e-05
        %v831 = vadd.f32 %v823, 1e-05
        %v832 = vadd.f32 %v824, 1e-05
        %v833 = vrsqrt.pop %v825
        %v834 = vrsqrt.pop %v826
        %v835 = vrsqrt.pop %v827
        %v836 = vrsqrt.pop %v828
        %v837 = vrsqrt.pop %v829
        %v838 = vrsqrt.pop %v830
        %v839 = vrsqrt.pop %v831
        %v840 = vrsqrt.pop %v832
        %v841 = vmul.f32 %v785, %v833
        %v842 = vmul.f32 %v786, %v834
        %v843 = vmul.f32 %v787, %v835
        %v844 = vmul.f32 %v788, %v836
        %v845 = vmul.f32 %v789, %v837
        %v846 = vmul.f32 %v790, %v838
        %v847 = vmul.f32 %v791, %v839
        %v848 = vmul.f32 %v792, %v840
        %v849 = vld [vmem:[%s3] sm:$0x1]
        %v851 = vlaneseq
        %v852 = vshrl.u32 %v851, 7
        %v853 = vsub.s32 0, %v852
        %v854 = vrot.slane %v849, %v853
        %v856 = vmul.f32 %v841, %v854
        %v857 = vmul.f32 %v842, %v854
        %v858 = vmul.f32 %v843, %v854
        %v859 = vmul.f32 %v844, %v854
        %v860 = vmul.f32 %v845, %v854
        %v861 = vmul.f32 %v846, %v854
        %v862 = vmul.f32 %v847, %v854
        %v863 = vmul.f32 %v848, %v854
        %v864 = vld [vmem:[%s4] sm:$0x1]
        %v866 = vlaneseq
        %v867 = vshrl.u32 %v866, 7
        %v868 = vsub.s32 0, %v867
        %v869 = vrot.slane %v864, %v868
        %v871 = vadd.f32 %v856, %v869
        %v872 = vadd.f32 %v857, %v869
        %v873 = vadd.f32 %v858, %v869
        %v874 = vadd.f32 %v859, %v869
        %v875 = vadd.f32 %v860, %v869
        %v876 = vadd.f32 %v861, %v869
        %v877 = vadd.f32 %v862, %v869
        %v878 = vadd.f32 %v863, %v869
        %v879 = vpack.c.bf16 %v872, %v871
        %v880 = vpack.c.bf16 %v874, %v873
        %v881 = vpack.c.bf16 %v876, %v875
        %v882 = vpack.c.bf16 %v878, %v877
        %v887 = vunpack.c.l.b16 %v879
        %v888 = vunpack.c.h.b16 %v879
        %v889 = vunpack.c.l.b16 %v880
        %v890 = vunpack.c.h.b16 %v880
        %v891 = vunpack.c.l.b16 %v881
        %v892 = vunpack.c.h.b16 %v881
        %v893 = vunpack.c.l.b16 %v882
        %v894 = vunpack.c.h.b16 %v882
        %v895 = vpack.c.b16 %v887, %v887
        %v896 = vpack.c.b16 %v888, %v888
        %v897 = vpack.c.b16 %v889, %v889
        %v898 = vpack.c.b16 %v890, %v890
        %v899 = vpack.c.b16 %v891, %v891
        %v900 = vpack.c.b16 %v892, %v892
        %v901 = vpack.c.b16 %v893, %v893
        %v902 = vpack.c.b16 %v894, %v894
        %911 = vst [vmem:[%s258] sm:$0xf] %v895
        %912 = vst [vmem:[%s258 + $0x4] sm:$0xf] %v896
        %913 = vst [vmem:[%s258 + $0x8] sm:$0xf] %v897
        %914 = vst [vmem:[%s258 + $0xc] sm:$0xf] %v898
        %915 = vst [vmem:[%s258 + $0x10] sm:$0xf] %v899
        %916 = vst [vmem:[%s258 + $0x14] sm:$0xf] %v900
        %917 = vst [vmem:[%s258 + $0x18] sm:$0xf] %v901
        %918 = vst [vmem:[%s258 + $0x1c] sm:$0xf] %v902
        %s919 = sand.u32 %s141, 1
        %s920 = scalar_lea.sflag [#allocation4], %s919
        %s921 = sand.u32 %s141, 1
        %s922 = smul.addr %s921, 32
        %s923 = scalar_lea.vmem [#allocation7], %s922
        // Predicated region
        $region49: #{tpu_custom_call.1} parent=39 // pred_check
          %p924 = pneg %p151
        $region50: #{tpu_custom_call.1} parent=39 // pred_check_branch
          %926 = sbr.rel (%p924) target = $region52
        $region51: #{tpu_custom_call.1} parent=39 // pred_region
          %s927 = smul.u32 8, %s23
          %s929 = ssub.s32 512, 512
          %930 = vsyncadd %s920, %s929
          %s931 = smul.addr %s927, 64
          %s932 = scalar_lea.hbm %s5, %s931
          %s933 = sshll.u32 %s923, 4
          %s934 = int_to_ptr.vmem [resolvable:$true] %s933
          %939 = dma.vmem_to_hbm [thread:$0]  %s934, 512, %s932, %s920, 64, 64, 4
        $region52: #{tpu_custom_call.1} parent=39 // pred_fallthru
          _
      $region40: #{tpu_custom_call.1} parent=5 // pred_fallthru
        _
      %p940 = scmp.le.s32.totalorder 2, %s18
      // Predicated region
      $region53: #{tpu_custom_call.1} parent=5 // pred_check
        %p941 = pneg %p940
      $region54: #{tpu_custom_call.1} parent=5 // pred_check_branch
        %943 = sbr.rel (%p941) target = $region56
      $region55: #{tpu_custom_call.1} parent=5 // pred_region
        %s944 = ssub.s32 %s18, 2
        // Predicated region
        $region57: #{tpu_custom_call.1} parent=55 // pred_check
          %p945 = pneg %p157
        $region58: #{tpu_custom_call.1} parent=55 // pred_check_branch
          %947 = sbr.rel (%p945) target = $region60
        $region59: #{tpu_custom_call.1} parent=55 // pred_region
          %s948 = sand.u32 %s142, 1
          %s949 = scalar_lea.sflag [#allocation4], %s948
          %s950 = sand.u32 %s142, 1
          %s951 = smul.addr %s950, 32
          %s952 = scalar_lea.vmem [#allocation7], %s951
          %953 = dma.done %s949, 512
        $region60: #{tpu_custom_call.1} parent=55 // pred_fallthru
          _
      $region56: #{tpu_custom_call.1} parent=5 // pred_fallthru
        _
    $region6: #{tpu_custom_call.1} parent=1 // loop_footer
      %s22 = sadd.s32 1, %s18
    $region7: #{tpu_custom_call.1} parent=1 // loop_footer_branch
      %17 = sbr.rel target = $region3
    $region8: #{tpu_custom_call.1} parent=1 // loop_exit
      _
    %954 = vsyncpa [#allocation3], 1
    %s955 = scalar_lea.sflag [#allocation3], 1
    %956 = vsyncpa %s955, 1
    %957 = vsyncpa [#allocation6], 1
    %958 = vsyncpa [#allocation4], 1
    %s959 = scalar_lea.sflag [#allocation4], 1
    %960 = vsyncpa %s959, 1

</llo_original>
